<compile_context>
chip_gen: v7x
topology: tpu7x:2x2x1
jax: 0.10.0
libtpu: 0.0.40
codegen_flags: <defaults>
</compile_context>

<pallas_src>
import jax
import jax.numpy as jnp
from jax.experimental import pallas as pl
from jax.experimental.pallas import tpu as pltpu

_LANE = 128  # examples packed per interleaved row (lane width)


def _linear_kernel(x_ref, wbig_ref, b_ref, o_ref):
    """x_ref:    (gb, in_f*128) f32 VMEM -- 128 feature-interleaved examples/row
       wbig_ref: (in_f*128, 128) f32 VMEM -- de-interleave + weight matrix
       b_ref:    (1,) f32 SMEM            -- bias scalar
       o_ref:    (gb, 128) f32 VMEM       -- one output per example, lane-dense
    """
    o_ref[...] = (
        jnp.dot(x_ref[...], wbig_ref[...], preferred_element_type=jnp.float32)
        + b_ref[0]
    ).astype(o_ref.dtype)


def _pick_block_rows(n_rows, max_block_rows):
    """Rows (of 128 examples each) per grid step.

    Big blocks to amortize the ~0.35 us/step pipeline overhead, but >= 2 grid
    steps once the batch is non-trivial so v7x's two TensorCores both run.
    """
    if n_rows <= 8:
        return n_rows                       # single block == full array
    gb = min(max_block_rows, -(-n_rows // 2))   # at least 2 grid steps
    gb = -(-gb // 8) * 8                        # sublane-aligned
    return min(gb, max_block_rows)


def linear_pallas(x, weight, bias, *, max_block_rows=1024):
    """Pallas path of nn.Linear(in_f, 1): y = x @ weight.T + bias.

    x: (B, in_f) f32, weight: (1, in_f) f32, bias: (1,) f32 -> (B, 1) f32.
    """
    B, in_f = x.shape
    out_f = weight.shape[0]
    assert out_f == 1 and weight.shape[1] == in_f
    assert max_block_rows >= 8 and max_block_rows % 8 == 0

    # Lane-align the batch.  B % 128 == 0  => zero-copy path (no pad pass).
    bp = -(-B // _LANE) * _LANE
    if bp != B:
        x = jnp.pad(x, ((0, bp - B), (0, 0)))
    n_rows = bp // _LANE
    row_w = in_f * _LANE

    # Free (bitcast) reshape: (bp, in_f) -> (n_rows, in_f*128).
    x2 = x.reshape(n_rows, row_w)

    # Wbig[e*in_f + k, e] = w[k]:  x2 @ Wbig de-interleaves and applies the
    # weights in one MXU pass, producing one output per lane.
    eye = jnp.eye(_LANE, dtype=jnp.float32)
    wbig = (eye[:, None, :] * weight.astype(jnp.float32).reshape(1, in_f, 1)
            ).reshape(row_w, _LANE)
    b_sc = bias.reshape(1).astype(jnp.float32)

    gb = _pick_block_rows(n_rows, max_block_rows)
    grid = pl.cdiv(n_rows, gb)

    out2 = pl.pallas_call(
        _linear_kernel,
        out_shape=jax.ShapeDtypeStruct((n_rows, _LANE), jnp.float32),
        grid_spec=pl.GridSpec(
            grid=(grid,),
            in_specs=[
                pl.BlockSpec((gb, row_w), lambda i: (i, 0)),        # x tile
                pl.BlockSpec((row_w, _LANE), lambda i: (0, 0)),     # Wbig (resident)
                pl.BlockSpec(memory_space=pltpu.MemorySpace.SMEM),  # bias scalar
            ],
            out_specs=pl.BlockSpec((gb, _LANE), lambda i: (i, 0)),
        ),
        compiler_params=pltpu.CompilerParams(
            dimension_semantics=("parallel",),       # shard steps across TCs (v7x)
            vmem_limit_bytes=32 * 1024 * 1024,       # headroom for larger tiles
        ),
    )(x2, wbig, b_sc)

    # Lane-dense (n_rows, 128) -> PyTorch (B, 1): free reshape; the slice (only
    # when the batch was padded) touches the tiny output, never x.
    y = out2.reshape(bp, 1)
    if bp != B:
        y = y[:B]
    return y.astype(x.dtype)


def linear_forward(x, weight, bias, *, use_pallas=None, max_block_rows=1024):
    """Forward of M2.  Small batches use one fused XLA op (launch overhead of a
    pallas_call dominates there); large batches use the Pallas kernel."""
    B = x.shape[0]
    if use_pallas is None:
        use_pallas = B >= 4096
    if not use_pallas:
        return x @ weight.T + bias
    return linear_pallas(x, weight, bias, max_block_rows=max_block_rows)


if __name__ == "__main__":
    key = jax.random.PRNGKey(0)
    k_w, k_b, k_x1, k_x2, k_x3 = jax.random.split(key, 5)

    IN, OUT = 5, 1
    bound = 1.0 / (IN ** 0.5)
    weight = jax.random.uniform(k_w, (OUT, IN), jnp.float32, -bound, bound)
    bias = jax.random.uniform(k_b, (OUT,), jnp.float32, -bound, bound)

    def ref(x):
        return x @ weight.T + bias

    # 1) Natural module shape (batch=8): fast path AND forced Pallas path.
    x1 = jax.random.normal(k_x1, (8, IN), jnp.float32)
    y_fast = linear_forward(x1, weight, bias)
    y_pall = linear_forward(x1, weight, bias, use_pallas=True)
    jax.block_until_ready((y_fast, y_pall))
    assert y_fast.shape == (8, OUT) and y_pall.shape == (8, OUT)
    assert jnp.allclose(y_fast, ref(x1), atol=2e-5, rtol=2e-5), "fast path mismatch"
    assert jnp.allclose(y_pall, ref(x1), atol=2e-5, rtol=2e-5), "pallas mismatch (B=8)"

    # 2) Lane-aligned batch -> zero-copy reshape path, grid > 1 ("parallel").
    x2 = jax.random.normal(k_x2, (4096, IN), jnp.float32)
    y2 = linear_forward(x2, weight, bias, use_pallas=True)
    jax.block_until_ready(y2)
    assert y2.shape == (4096, OUT)
    assert jnp.allclose(y2, ref(x2), atol=2e-5, rtol=2e-5), "pallas mismatch (B=4096)"

    # 3) Ragged batch (not a multiple of 128) through the Pallas path.
    x3 = jax.random.normal(k_x3, (1000, IN), jnp.float32)
    y3 = linear_forward(x3, weight, bias, use_pallas=True)
    jax.block_until_ready(y3)
    assert y3.shape == (1000, OUT)
    assert jnp.allclose(y3, ref(x3), atol=2e-5, rtol=2e-5), "pallas mismatch (B=1000)"

    print("KERNEL_OK")
</pallas_src>

<mosaic_0001>
module attributes {stable_mosaic.version = 11 : i64} {
  func.func @_linear_kernel(%arg0: i32, %arg1: memref<1x640xf32, #tpu.memory_space<vmem>>, %arg2: memref<640x128xf32, #tpu.memory_space<vmem>>, %arg3: memref<1xf32, #tpu.memory_space<smem>>, %arg4: memref<1x128xf32, #tpu.memory_space<vmem>>) attributes {dimension_semantics = [#tpu.dimension_semantics<parallel>], iteration_bounds = array<i64: 1>, scalar_prefetch = 0 : i64, scratch_operands = 0 : i64, tpu.core_type = #tpu.core_type<tc>, window_params = [{transform_indices = @transform_0, window_bounds = array<i64: 1, 640>}, {pipeline_mode = #tpu.pipeline_mode<synchronous>, transform_indices = @transform_1, window_bounds = array<i64: 640, 128>}, {transform_indices = @transform_2, window_bounds = array<i64: 1>}, {transform_indices = @transform_3, window_bounds = array<i64: 1, 128>}]} {
    %c0 = arith.constant 0 : index
    %c0_0 = arith.constant 0 : index
    %0 = vector.load %arg1[%c0, %c0_0] : memref<1x640xf32, #tpu.memory_space<vmem>>, vector<1x640xf32>
    %c0_1 = arith.constant 0 : index
    %c0_2 = arith.constant 0 : index
    %1 = vector.load %arg2[%c0_1, %c0_2] : memref<640x128xf32, #tpu.memory_space<vmem>>, vector<640x128xf32>
    %cst = arith.constant dense<0.000000e+00> : vector<1x128xf32>
    %2 = tpu.matmul %0, %1, %cst {dimension_numbers = #tpu.dot_dimension_numbers<[1], [0], [0], [1], [0, 0, 1, 1], [], []>} : vector<1x640xf32>, vector<640x128xf32>, vector<1x128xf32> -> vector<1x128xf32>
    %c0_3 = arith.constant 0 : index
    %3 = memref.load %arg3[%c0_3] : memref<1xf32, #tpu.memory_space<smem>>
    %4 = vector.broadcast %3 : f32 to vector<1x128xf32>
    %5 = arith.addf %2, %4 : vector<1x128xf32>
    %c0_4 = arith.constant 0 : index
    %c0_5 = arith.constant 0 : index
    %6 = vector.load %arg4[%c0_4, %c0_5] : memref<1x128xf32, #tpu.memory_space<vmem>>, vector<1x128xf32>
    tpu.vector_store %arg4[%c0_4, %c0_5], %5 {strides = array<i32>} : memref<1x128xf32, #tpu.memory_space<vmem>>, vector<1x128xf32>,
    return
  }
  func.func @transform_0(%arg0: i32) -> (i32, i32) {
    %c0_i32 = arith.constant 0 : i32
    %c0_i32_0 = arith.constant 0 : i32
    return %arg0, %c0_i32 : i32, i32
  }
  func.func @transform_1(%arg0: i32) -> (i32, i32) {
    %c0_i32 = arith.constant 0 : i32
    %c0_i32_0 = arith.constant 0 : i32
    %c0_i32_1 = arith.constant 0 : i32
    return %c0_i32, %c0_i32_0 : i32, i32
  }
  func.func @transform_2(%arg0: i32) -> i32 {
    %c0_i32 = arith.constant 0 : i32
    %c0_i32_0 = arith.constant 0 : i32
    return %c0_i32 : i32
  }
  func.func @transform_3(%arg0: i32) -> (i32, i32) {
    %c0_i32 = arith.constant 0 : i32
    %c0_i32_0 = arith.constant 0 : i32
    return %arg0, %c0_i32 : i32, i32
  }
}

</mosaic_0001>

<llo_original>
// kernel: tpu_custom_call.1
$region0: #{tpu_custom_call.1}
  #allocation0 [shape = 'u32[]', space=smem, size = 0x4, offset = 0x4, fixed_abs, tag = 'smem constant byte address 0x4 - core index']
  #allocation1 [shape = 'u32[144,128]{1,0:T(1,128)}', space=vmem, size = 0x12000, scoped, tag = 'internal scratch']
  #allocation2 [shape = 'f32[1]{0:T(128)S(6)}', space=smem, size = 0x200, scoped, tag = 'scoped memory for tpu_custom_call.1']
  %s0 = inlined_call_operand.hbm [shape: f32[1,640], index: 0, kind: input, shape index: {}]
  %s1 = inlined_call_operand.hbm [shape: f32[640,128], index: 1, kind: input, shape index: {}]
  %s2 = inlined_call_operand.<no memory space> [shape: f32[1], index: 2, kind: input, shape index: {}]
  %s3 = inlined_call_operand.hbm [shape: f32[1,128], index: 3, kind: output, shape index: {}]
  %s4 = sld [smem:[#allocation0]]
  $region30: #{tpu_custom_call.1} parent=0
    _
  %s6 = ssub.s32 1, %s4
  %s7 = scalar_select 0, %s6, %s4
  %8 = sst [smem:[#allocation2]] %s2
  $region1: #{tpu_custom_call.1} parent=0
    #allocation3 [shape = 'u8[2560]{0}', space=vmem, size = 0xc00, scoped, tag = 'input window, operand 0, single buffered']
    #allocation4 [shape = 's32[1]{0}', space=sflag, size = 0x4, scoped, tag = 'scoped memory for tpu_custom_call.1']
    #allocation5 [shape = 's32[1]{0}', space=sflag, size = 0x4, scoped, tag = 'scoped memory for tpu_custom_call.1']
    #allocation6 [shape = 'u8[327680]{0}', space=vmem, size = 0x50000, scoped, tag = 'input window, operand 1, single buffered']
    #allocation7 [shape = 's32[1]{0}', space=sflag, size = 0x4, scoped, tag = 'scoped memory for tpu_custom_call.1']
    #allocation8 [shape = 'u8[512]{0}', space=vmem, size = 0x400, scoped, tag = 'output window, operand 0, single buffered']
    %9 = vsyncpa [#allocation4], 0
    %10 = vsyncpa [#allocation7], 0
    %11 = vsyncpa [#allocation5], 0
    // Predicated region
    $region2: #{tpu_custom_call.1} parent=1 // pred_check
      _
    $region3: #{tpu_custom_call.1} parent=1 // pred_check_branch
      %13 = sbr.rel (0) target = $region5
    $region4: #{tpu_custom_call.1} parent=1 // pred_region
      %s15 = ssub.s32 80, 80
      %16 = vsyncadd [#allocation4], %s15
      %s18 = sshll.u32 [#allocation3], 4
      %s19 = int_to_ptr.vmem [resolvable:$true] %s18
      %21 = dma.hbm_to_vmem [thread:$0]  %s0, 80, %s19, [#allocation4]
    $region5: #{tpu_custom_call.1} parent=1 // pred_fallthru
      _
    // Predicated region
    $region6: #{tpu_custom_call.1} parent=1 // pred_check
      _
    $region7: #{tpu_custom_call.1} parent=1 // pred_check_branch
      %23 = sbr.rel (0) target = $region9
    $region8: #{tpu_custom_call.1} parent=1 // pred_region
      %s25 = ssub.s32 10240, 10240
      %26 = vsyncadd [#allocation7], %s25
      %s27 = sshll.u32 [#allocation6], 4
      %s28 = int_to_ptr.vmem [resolvable:$true] %s27
      %33 = dma.hbm_to_vmem [thread:$0]  %s1, 10240, %s28, [#allocation7], 128, 128, 8
    $region9: #{tpu_custom_call.1} parent=1 // pred_fallthru
      _
    // Predicated region
    $region10: #{tpu_custom_call.1} parent=1 // pred_check
      _
    $region11: #{tpu_custom_call.1} parent=1 // pred_check_branch
      %35 = sbr.rel (0) target = $region13
    $region12: #{tpu_custom_call.1} parent=1 // pred_region
      _
    $region13: #{tpu_custom_call.1} parent=1 // pred_fallthru
      _
    // Predicated region
    $region14: #{tpu_custom_call.1} parent=1 // pred_check
      _
    $region15: #{tpu_custom_call.1} parent=1 // pred_check_branch
      %37 = sbr.rel (0) target = $region17
    $region16: #{tpu_custom_call.1} parent=1 // pred_region
      %38 = dma.done [#allocation4], 80
    $region17: #{tpu_custom_call.1} parent=1 // pred_fallthru
      _
    // Predicated region
    $region18: #{tpu_custom_call.1} parent=1 // pred_check
      _
    $region19: #{tpu_custom_call.1} parent=1 // pred_check_branch
      %40 = sbr.rel (0) target = $region21
    $region20: #{tpu_custom_call.1} parent=1 // pred_region
      %41 = dma.done [#allocation7], 10240
    $region21: #{tpu_custom_call.1} parent=1 // pred_fallthru
      _
    %v42 = vld [vmem:[#allocation3] sm:$0x1f]
    %v43 = vld [vmem:[#allocation6] sm:$0xff]
    %v44 = vld [vmem:[#allocation6 + $0x8] sm:$0xff]
    %v45 = vld [vmem:[#allocation6 + $0x10] sm:$0xff]
    %v46 = vld [vmem:[#allocation6 + $0x18] sm:$0xff]
    %v47 = vld [vmem:[#allocation6 + $0x20] sm:$0xff]
    %v48 = vld [vmem:[#allocation6 + $0x28] sm:$0xff]
    %v49 = vld [vmem:[#allocation6 + $0x30] sm:$0xff]
    %v50 = vld [vmem:[#allocation6 + $0x38] sm:$0xff]
    %v51 = vld [vmem:[#allocation6 + $0x40] sm:$0xff]
    %v52 = vld [vmem:[#allocation6 + $0x48] sm:$0xff]
    %v53 = vld [vmem:[#allocation6 + $0x50] sm:$0xff]
    %v54 = vld [vmem:[#allocation6 + $0x58] sm:$0xff]
    %v55 = vld [vmem:[#allocation6 + $0x60] sm:$0xff]
    %v56 = vld [vmem:[#allocation6 + $0x68] sm:$0xff]
    %v57 = vld [vmem:[#allocation6 + $0x70] sm:$0xff]
    %v58 = vld [vmem:[#allocation6 + $0x78] sm:$0xff]
    %v59 = vld [vmem:[#allocation6 + $0x80] sm:$0xff]
    %v60 = vld [vmem:[#allocation6 + $0x88] sm:$0xff]
    %v61 = vld [vmem:[#allocation6 + $0x90] sm:$0xff]
    %v62 = vld [vmem:[#allocation6 + $0x98] sm:$0xff]
    %v63 = vld [vmem:[#allocation6 + $0xa0] sm:$0xff]
    %v64 = vld [vmem:[#allocation6 + $0xa8] sm:$0xff]
    %v65 = vld [vmem:[#allocation6 + $0xb0] sm:$0xff]
    %v66 = vld [vmem:[#allocation6 + $0xb8] sm:$0xff]
    %v67 = vld [vmem:[#allocation6 + $0xc0] sm:$0xff]
    %v68 = vld [vmem:[#allocation6 + $0xc8] sm:$0xff]
    %v69 = vld [vmem:[#allocation6 + $0xd0] sm:$0xff]
    %v70 = vld [vmem:[#allocation6 + $0xd8] sm:$0xff]
    %v71 = vld [vmem:[#allocation6 + $0xe0] sm:$0xff]
    %v72 = vld [vmem:[#allocation6 + $0xe8] sm:$0xff]
    %v73 = vld [vmem:[#allocation6 + $0xf0] sm:$0xff]
    %v74 = vld [vmem:[#allocation6 + $0xf8] sm:$0xff]
    %v75 = vld [vmem:[#allocation6 + $0x100] sm:$0xff]
    %v76 = vld [vmem:[#allocation6 + $0x108] sm:$0xff]
    %v77 = vld [vmem:[#allocation6 + $0x110] sm:$0xff]
    %v78 = vld [vmem:[#allocation6 + $0x118] sm:$0xff]
    %v79 = vld [vmem:[#allocation6 + $0x120] sm:$0xff]
    %v80 = vld [vmem:[#allocation6 + $0x128] sm:$0xff]
    %v81 = vld [vmem:[#allocation6 + $0x130] sm:$0xff]
    %v82 = vld [vmem:[#allocation6 + $0x138] sm:$0xff]
    %v83 = vld [vmem:[#allocation6 + $0x140] sm:$0xff]
    %v84 = vld [vmem:[#allocation6 + $0x148] sm:$0xff]
    %v85 = vld [vmem:[#allocation6 + $0x150] sm:$0xff]
    %v86 = vld [vmem:[#allocation6 + $0x158] sm:$0xff]
    %v87 = vld [vmem:[#allocation6 + $0x160] sm:$0xff]
    %v88 = vld [vmem:[#allocation6 + $0x168] sm:$0xff]
    %v89 = vld [vmem:[#allocation6 + $0x170] sm:$0xff]
    %v90 = vld [vmem:[#allocation6 + $0x178] sm:$0xff]
    %v91 = vld [vmem:[#allocation6 + $0x180] sm:$0xff]
    %v92 = vld [vmem:[#allocation6 + $0x188] sm:$0xff]
    %v93 = vld [vmem:[#allocation6 + $0x190] sm:$0xff]
    %v94 = vld [vmem:[#allocation6 + $0x198] sm:$0xff]
    %v95 = vld [vmem:[#allocation6 + $0x1a0] sm:$0xff]
    %v96 = vld [vmem:[#allocation6 + $0x1a8] sm:$0xff]
    %v97 = vld [vmem:[#allocation6 + $0x1b0] sm:$0xff]
    %v98 = vld [vmem:[#allocation6 + $0x1b8] sm:$0xff]
    %v99 = vld [vmem:[#allocation6 + $0x1c0] sm:$0xff]
    %v100 = vld [vmem:[#allocation6 + $0x1c8] sm:$0xff]
    %v101 = vld [vmem:[#allocation6 + $0x1d0] sm:$0xff]
    %v102 = vld [vmem:[#allocation6 + $0x1d8] sm:$0xff]
    %v103 = vld [vmem:[#allocation6 + $0x1e0] sm:$0xff]
    %v104 = vld [vmem:[#allocation6 + $0x1e8] sm:$0xff]
    %v105 = vld [vmem:[#allocation6 + $0x1f0] sm:$0xff]
    %v106 = vld [vmem:[#allocation6 + $0x1f8] sm:$0xff]
    %v107 = vld [vmem:[#allocation6 + $0x200] sm:$0xff]
    %v108 = vld [vmem:[#allocation6 + $0x208] sm:$0xff]
    %v109 = vld [vmem:[#allocation6 + $0x210] sm:$0xff]
    %v110 = vld [vmem:[#allocation6 + $0x218] sm:$0xff]
    %v111 = vld [vmem:[#allocation6 + $0x220] sm:$0xff]
    %v112 = vld [vmem:[#allocation6 + $0x228] sm:$0xff]
    %v113 = vld [vmem:[#allocation6 + $0x230] sm:$0xff]
    %v114 = vld [vmem:[#allocation6 + $0x238] sm:$0xff]
    %v115 = vld [vmem:[#allocation6 + $0x240] sm:$0xff]
    %v116 = vld [vmem:[#allocation6 + $0x248] sm:$0xff]
    %v117 = vld [vmem:[#allocation6 + $0x250] sm:$0xff]
    %v118 = vld [vmem:[#allocation6 + $0x258] sm:$0xff]
    %v119 = vld [vmem:[#allocation6 + $0x260] sm:$0xff]
    %v120 = vld [vmem:[#allocation6 + $0x268] sm:$0xff]
    %v121 = vld [vmem:[#allocation6 + $0x270] sm:$0xff]
    %v122 = vld [vmem:[#allocation6 + $0x278] sm:$0xff]
    %s123 = sld [smem:[#allocation2]]
    %v124 = vstv %s123
    %v126 = vlaneseq
    %v127 = vshrl.u32 %v126, 7
    %v128 = vsub.s32 0, %v127
    %v129 = vrot.slane %v42, %v128
    %v130 = vlaneseq
    %v131 = vshrl.u32 %v130, 7
    %v132 = vsub.s32 1, %v131
    %v133 = vrot.slane %v42, %v132
    %v134 = vlaneseq
    %v135 = vshrl.u32 %v134, 7
    %v136 = vsub.s32 2, %v135
    %v137 = vrot.slane %v42, %v136
    %v138 = vlaneseq
    %v139 = vshrl.u32 %v138, 7
    %v140 = vsub.s32 3, %v139
    %v141 = vrot.slane %v42, %v140
    %v142 = vlaneseq
    %v143 = vshrl.u32 %v142, 7
    %v144 = vsub.s32 4, %v143
    %v145 = vrot.slane %v42, %v144
    %151 = vmatprep.subr.mxu0 0.0
    %152 = vmatpush1.msra.mxu0 %v43
    %153 = vmatprep.subr.mxu0 0.0
    %154 = vmatpush1.msra.mxu0 %v44
    %155 = vmatprep.subr.mxu0 0.0
    %156 = vmatpush1.msra.mxu0 %v45
    %157 = vmatprep.subr.mxu0 0.0
    %158 = vmatpush1.msra.mxu0 %v46
    %159 = vmatprep.subr.mxu0 0.0
    %160 = vmatpush1.msra.mxu0 %v47
    %161 = vmatprep.subr.mxu0 0.0
    %162 = vmatpush1.msra.mxu0 %v48
    %163 = vmatprep.subr.mxu0 0.0
    %164 = vmatpush1.msra.mxu0 %v49
    %165 = vmatprep.subr.mxu0 0.0
    %166 = vmatpush1.msra.mxu0 %v50
    %167 = vmatprep.subr.mxu0 0.0
    %168 = vmatpush1.msra.mxu0 %v51
    %169 = vmatprep.subr.mxu0 0.0
    %170 = vmatpush1.msra.mxu0 %v52
    %171 = vmatprep.subr.mxu0 0.0
    %172 = vmatpush1.msra.mxu0 %v53
    %173 = vmatprep.subr.mxu0 0.0
    %174 = vmatpush1.msra.mxu0 %v54
    %175 = vmatprep.subr.mxu0 0.0
    %176 = vmatpush1.msra.mxu0 %v55
    %177 = vmatprep.subr.mxu0 0.0
    %178 = vmatpush1.msra.mxu0 %v56
    %179 = vmatprep.subr.mxu0 0.0
    %180 = vmatpush1.msra.mxu0 %v57
    %181 = vmatprep.subr.mxu0 0.0
    %182 = vmatpush1.msra.mxu0 %v58
    %183 = vmatprep.subr.mxu0 0.0
    %184 = vmatpush1.msra.mxu0 %v59
    %185 = vmatprep.subr.mxu0 0.0
    %186 = vmatpush1.msra.mxu0 %v60
    %187 = vmatprep.subr.mxu0 0.0
    %188 = vmatpush1.msra.mxu0 %v61
    %189 = vmatprep.subr.mxu0 0.0
    %190 = vmatpush1.msra.mxu0 %v62
    %191 = vmatprep.subr.mxu0 0.0
    %192 = vmatpush1.msra.mxu0 %v63
    %193 = vmatprep.subr.mxu0 0.0
    %194 = vmatpush1.msra.mxu0 %v64
    %195 = vmatprep.subr.mxu0 0.0
    %196 = vmatpush1.msra.mxu0 %v65
    %197 = vmatprep.subr.mxu0 0.0
    %198 = vmatpush1.msra.mxu0 %v66
    %199 = vmatprep.subr.mxu0 0.0
    %200 = vmatpush1.msra.mxu0 %v67
    %201 = vmatprep.subr.mxu0 0.0
    %202 = vmatpush1.msra.mxu0 %v68
    %203 = vmatprep.subr.mxu0 0.0
    %204 = vmatpush1.msra.mxu0 %v69
    %205 = vmatprep.subr.mxu0 0.0
    %206 = vmatpush1.msra.mxu0 %v70
    %207 = vmatprep.subr.mxu0 0.0
    %208 = vmatpush1.msra.mxu0 %v71
    %209 = vmatprep.subr.mxu0 0.0
    %210 = vmatpush1.msra.mxu0 %v72
    %211 = vmatprep.subr.mxu0 0.0
    %212 = vmatpush1.msra.mxu0 %v73
    %213 = vmatprep.subr.mxu0 0.0
    %214 = vmatpush1.msra.mxu0 %v74
    %215 = vmatprep.mubr.f32.mxu0 %v133
    %216 = vmatmul.mubr.f32.gmra.mrb[0].mxu0 %v129
    %v217 = vpop.f32.mrb[0].mxu0
    %v218 = vadd.f32 %v124, %v217
    %v219 = vpop.f32.mrb[0].mxu0
    %220 = vdwg.mxu0
    %221 = vmatprep.subr.mxu0 0.0
    %222 = vmatpush1.msra.mxu0 %v75
    %223 = vmatprep.subr.mxu0 0.0
    %224 = vmatpush1.msra.mxu0 %v76
    %225 = vmatprep.subr.mxu0 0.0
    %226 = vmatpush1.msra.mxu0 %v77
    %227 = vmatprep.subr.mxu0 0.0
    %228 = vmatpush1.msra.mxu0 %v78
    %229 = vmatprep.subr.mxu0 0.0
    %230 = vmatpush1.msra.mxu0 %v79
    %231 = vmatprep.subr.mxu0 0.0
    %232 = vmatpush1.msra.mxu0 %v80
    %233 = vmatprep.subr.mxu0 0.0
    %234 = vmatpush1.msra.mxu0 %v81
    %235 = vmatprep.subr.mxu0 0.0
    %236 = vmatpush1.msra.mxu0 %v82
    %237 = vmatprep.subr.mxu0 0.0
    %238 = vmatpush1.msra.mxu0 %v83
    %239 = vmatprep.subr.mxu0 0.0
    %240 = vmatpush1.msra.mxu0 %v84
    %241 = vmatprep.subr.mxu0 0.0
    %242 = vmatpush1.msra.mxu0 %v85
    %243 = vmatprep.subr.mxu0 0.0
    %244 = vmatpush1.msra.mxu0 %v86
    %245 = vmatprep.subr.mxu0 0.0
    %246 = vmatpush1.msra.mxu0 %v87
    %247 = vmatprep.subr.mxu0 0.0
    %248 = vmatpush1.msra.mxu0 %v88
    %249 = vmatprep.subr.mxu0 0.0
    %250 = vmatpush1.msra.mxu0 %v89
    %251 = vmatprep.subr.mxu0 0.0
    %252 = vmatpush1.msra.mxu0 %v90
    %253 = vmatprep.subr.mxu0 0.0
    %254 = vmatpush1.msra.mxu0 %v91
    %255 = vmatprep.subr.mxu0 0.0
    %256 = vmatpush1.msra.mxu0 %v92
    %257 = vmatprep.subr.mxu0 0.0
    %258 = vmatpush1.msra.mxu0 %v93
    %259 = vmatprep.subr.mxu0 0.0
    %260 = vmatpush1.msra.mxu0 %v94
    %261 = vmatprep.subr.mxu0 0.0
    %262 = vmatpush1.msra.mxu0 %v95
    %263 = vmatprep.subr.mxu0 0.0
    %264 = vmatpush1.msra.mxu0 %v96
    %265 = vmatprep.subr.mxu0 0.0
    %266 = vmatpush1.msra.mxu0 %v97
    %267 = vmatprep.subr.mxu0 0.0
    %268 = vmatpush1.msra.mxu0 %v98
    %269 = vmatprep.subr.mxu0 0.0
    %270 = vmatpush1.msra.mxu0 %v99
    %271 = vmatprep.subr.mxu0 0.0
    %272 = vmatpush1.msra.mxu0 %v100
    %273 = vmatprep.subr.mxu0 0.0
    %274 = vmatpush1.msra.mxu0 %v101
    %275 = vmatprep.subr.mxu0 0.0
    %276 = vmatpush1.msra.mxu0 %v102
    %277 = vmatprep.subr.mxu0 0.0
    %278 = vmatpush1.msra.mxu0 %v103
    %279 = vmatprep.subr.mxu0 0.0
    %280 = vmatpush1.msra.mxu0 %v104
    %281 = vmatprep.subr.mxu0 0.0
    %282 = vmatpush1.msra.mxu0 %v105
    %283 = vmatprep.subr.mxu0 0.0
    %284 = vmatpush1.msra.mxu0 %v106
    %285 = vmatprep.mubr.f32.mxu0 %v141
    %286 = vmatmul.mubr.f32.gmra.mrb[0].mxu0 %v137
    %v287 = vpop.f32.mrb[0].mxu0
    %v288 = vadd.f32 %v218, %v287
    %v289 = vpop.f32.mrb[0].mxu0
    %290 = vdwg.mxu0
    %291 = vmatprep.subr.mxu0 0.0
    %292 = vmatpush1.msra.mxu0 %v107
    %293 = vmatprep.subr.mxu0 0.0
    %294 = vmatpush1.msra.mxu0 %v108
    %295 = vmatprep.subr.mxu0 0.0
    %296 = vmatpush1.msra.mxu0 %v109
    %297 = vmatprep.subr.mxu0 0.0
    %298 = vmatpush1.msra.mxu0 %v110
    %299 = vmatprep.subr.mxu0 0.0
    %300 = vmatpush1.msra.mxu0 %v111
    %301 = vmatprep.subr.mxu0 0.0
    %302 = vmatpush1.msra.mxu0 %v112
    %303 = vmatprep.subr.mxu0 0.0
    %304 = vmatpush1.msra.mxu0 %v113
    %305 = vmatprep.subr.mxu0 0.0
    %306 = vmatpush1.msra.mxu0 %v114
    %307 = vmatprep.subr.mxu0 0.0
    %308 = vmatpush1.msra.mxu0 %v115
    %309 = vmatprep.subr.mxu0 0.0
    %310 = vmatpush1.msra.mxu0 %v116
    %311 = vmatprep.subr.mxu0 0.0
    %312 = vmatpush1.msra.mxu0 %v117
    %313 = vmatprep.subr.mxu0 0.0
    %314 = vmatpush1.msra.mxu0 %v118
    %315 = vmatprep.subr.mxu0 0.0
    %316 = vmatpush1.msra.mxu0 %v119
    %317 = vmatprep.subr.mxu0 0.0
    %318 = vmatpush1.msra.mxu0 %v120
    %319 = vmatprep.subr.mxu0 0.0
    %320 = vmatpush1.msra.mxu0 %v121
    %321 = vmatprep.subr.mxu0 0.0
    %322 = vmatpush1.msra.mxu0 %v122
    %323 = vmatprep.subr.mxu0 0.0
    %324 = vmatpush1.msra.mxu0 0.0
    %325 = vmatprep.subr.mxu0 0.0
    %326 = vmatpush1.msra.mxu0 0.0
    %327 = vmatprep.subr.mxu0 0.0
    %328 = vmatpush1.msra.mxu0 0.0
    %329 = vmatprep.subr.mxu0 0.0
    %330 = vmatpush1.msra.mxu0 0.0
    %331 = vmatprep.subr.mxu0 0.0
    %332 = vmatpush1.msra.mxu0 0.0
    %333 = vmatprep.subr.mxu0 0.0
    %334 = vmatpush1.msra.mxu0 0.0
    %335 = vmatprep.subr.mxu0 0.0
    %336 = vmatpush1.msra.mxu0 0.0
    %337 = vmatprep.subr.mxu0 0.0
    %338 = vmatpush1.msra.mxu0 0.0
    %339 = vmatprep.subr.mxu0 0.0
    %340 = vmatpush1.msra.mxu0 0.0
    %341 = vmatprep.subr.mxu0 0.0
    %342 = vmatpush1.msra.mxu0 0.0
    %343 = vmatprep.subr.mxu0 0.0
    %344 = vmatpush1.msra.mxu0 0.0
    %345 = vmatprep.subr.mxu0 0.0
    %346 = vmatpush1.msra.mxu0 0.0
    %347 = vmatprep.subr.mxu0 0.0
    %348 = vmatpush1.msra.mxu0 0.0
    %349 = vmatprep.subr.mxu0 0.0
    %350 = vmatpush1.msra.mxu0 0.0
    %351 = vmatprep.subr.mxu0 0.0
    %352 = vmatpush1.msra.mxu0 0.0
    %353 = vmatprep.subr.mxu0 0.0
    %354 = vmatpush1.msra.mxu0 0.0
    %355 = vmatprep.mubr.f32.mxu0 0.0
    %356 = vmatmul.mubr.f32.gmra.mrb[0].mxu0 %v145
    %v357 = vpop.f32.mrb[0].mxu0
    %v358 = vadd.f32 %v288, %v357
    %v359 = vpop.f32.mrb[0].mxu0
    %360 = vdwg.mxu0
    %361 = vst [vmem:[#allocation8] sm:$0x1] %v358
    // Predicated region
    $region22: #{tpu_custom_call.1} parent=1 // pred_check
      _
    $region23: #{tpu_custom_call.1} parent=1 // pred_check_branch
      %363 = sbr.rel (0) target = $region25
    $region24: #{tpu_custom_call.1} parent=1 // pred_region
      %s365 = ssub.s32 16, 16
      %366 = vsyncadd [#allocation5], %s365
      %s368 = sshll.u32 [#allocation8], 4
      %s369 = int_to_ptr.vmem [resolvable:$true] %s368
      %371 = dma.vmem_to_hbm [thread:$0]  %s369, 16, %s3, [#allocation5]
    $region25: #{tpu_custom_call.1} parent=1 // pred_fallthru
      _
    // Predicated region
    $region26: #{tpu_custom_call.1} parent=1 // pred_check
      _
    $region27: #{tpu_custom_call.1} parent=1 // pred_check_branch
      %373 = sbr.rel (0) target = $region29
    $region28: #{tpu_custom_call.1} parent=1 // pred_region
      %374 = dma.done [#allocation5], 16
    $region29: #{tpu_custom_call.1} parent=1 // pred_fallthru
      _
    %375 = vsyncpa [#allocation4], 1
    %376 = vsyncpa [#allocation7], 1
    %377 = vsyncpa [#allocation5], 1

</llo_original>
